<compile_context>
chip_gen: v7x
topology: tpu7x:2x2x1
jax: 0.10.0
libtpu: 0.0.40
codegen_flags: <defaults>
</compile_context>

<pallas_src>
import functools

import jax
import jax.numpy as jnp
from jax.experimental import pallas as pl
from jax.experimental.pallas import tpu as pltpu


# ----------------------------- in-kernel math ------------------------------

_SQRT_HALF = 0.7071067811865476


def _erf_f32(z):
    # Abramowitz & Stegun 7.1.26, |err| ~ 1.5e-7 in f32 before the approx
    # reciprocal (the EUP vrcp adds ~1e-3-level absolute error on erf, well
    # under the bf16-matmul tolerance of this kernel).
    # TODO(synk): on v6e/v7x the polynomial could be evaluated in bf16 (2x VALU
    # packing) or replaced by jax.lax.erf once its Mosaic lowering is
    # guaranteed; kept f32 here for accuracy headroom.
    a1, a2, a3, a4, a5 = (0.254829592, -0.284496736, 1.421413741,
                          -1.453152027, 1.061405429)
    p = 0.3275911
    sgn = jnp.where(z >= 0.0, 1.0, -1.0)
    za = jnp.abs(z)
    # Divide -> EUP (free bundle slot) instead of VALU.
    t = pl.reciprocal(1.0 + p * za, approx=True)
    poly = ((((a5 * t + a4) * t + a3) * t + a2) * t + a1) * t
    return sgn * (1.0 - poly * jnp.exp(-za * za))


def _gelu_exact(x):
    # nn.GELU() default (approximate='none'): 0.5 * x * (1 + erf(x / sqrt(2)))
    return 0.5 * x * (1.0 + _erf_f32(x * _SQRT_HALF))


# --------------------------------- kernels ----------------------------------

def _mlp_resident_kernel(x_ref, wfc_ref, bfc_ref, wproj_ref, bproj_ref,
                         out_ref, acc_ref, *, block_h):
    """1-D grid over row tiles; full weights resident in VMEM.

    Static inner loop over hidden chunks so the (M, 4C) activation is never
    materialized; weights are DMA'd from HBM once per core, not per row tile.
    """
    H = wfc_ref.shape[1]
    n_h = H // block_h

    acc_ref[...] = jnp.zeros_like(acc_ref)
    xb = x_ref[...]                                           # bf16 (TM, C)

    for h in range(n_h):                                      # static unroll
        lo = h * block_h
        f = jnp.dot(xb, wfc_ref[:, lo:lo + block_h],          # (TM, TH) f32
                    preferred_element_type=jnp.float32)
        f = _gelu_exact(f + bfc_ref[:, lo:lo + block_h])
        acc_ref[...] += jnp.dot(f.astype(jnp.bfloat16),
                                wproj_ref[lo:lo + block_h, :],
                                preferred_element_type=jnp.float32)

    out_ref[...] = (acc_ref[...] + bproj_ref[...]).astype(out_ref.dtype)


def _mlp_chunked_kernel(x_ref, wfc_ref, bfc_ref, wproj_ref, bproj_ref,
                        out_ref, acc_ref):
    """2-D grid (row_tile i, hidden_tile h); hidden axis is the reduction."""
    h = pl.program_id(1)

    @pl.when(h == 0)
    def _():
        acc_ref[...] = jnp.zeros_like(acc_ref)

    f = jnp.dot(x_ref[...], wfc_ref[...],                     # bf16 x bf16 -> f32
                preferred_element_type=jnp.float32) + bfc_ref[...]
    f = _gelu_exact(f)
    acc_ref[...] += jnp.dot(f.astype(jnp.bfloat16), wproj_ref[...],
                            preferred_element_type=jnp.float32)

    @pl.when(h == pl.num_programs(1) - 1)
    def _():
        out_ref[...] = (acc_ref[...] + bproj_ref[...]).astype(out_ref.dtype)


# -------------------------------- wrapper -----------------------------------

def _round_up(v, m):
    return -(-v // m) * m


def _pick_block_h(H, requested):
    if requested is not None:
        assert H % requested == 0 and (requested % 128 == 0 or requested == H), \
            (H, requested)
        return requested
    if H <= 1024:
        return H
    for cand in (1024, 896, 768, 640, 512, 384, 256, 128):
        if H % cand == 0:
            return cand
    return H  # full-dim block is always legal


def mlp_pallas(x, wfc, bfc, wproj, bproj, *, block_m=None, block_h=None,
               force_chunked=False):
    """x: (..., C); wfc: (C, 4C); bfc: (4C,); wproj: (4C, C); bproj: (C,).

    Weights are stored pre-transposed as (in, out), i.e. torch_weight.T, so the
    kernel computes y = x @ W + b  (== torch's x @ W.T + b).
    """
    orig_shape = x.shape
    orig_dtype = x.dtype
    C = x.shape[-1]
    H = wfc.shape[-1]
    assert wfc.shape == (C, H) and wproj.shape == (H, C)
    assert bfc.shape == (H,) and bproj.shape == (C,)

    # Cast activations & weights to bf16 once (MXU inputs); biases stay f32.
    x2 = x.reshape(-1, C).astype(jnp.bfloat16)
    M = x2.shape[0]
    wfc_bf = wfc.astype(jnp.bfloat16)
    wproj_bf = wproj.astype(jnp.bfloat16)
    bfc2 = bfc.reshape(1, H).astype(jnp.float32)
    bproj2 = bproj.reshape(1, C).astype(jnp.float32)

    block_h = _pick_block_h(H, block_h)

    out_itemsize = jnp.dtype(orig_dtype).itemsize
    # Conservative working-set budget: fits v7x (64 MiB/TC) with headroom and
    # is trivially safe on v5e/v6e (128 MiB).
    VMEM_BUDGET = 40 << 20

    def _working_set(bm, bh, resident):
        b = 0
        if resident:
            b += 2 * 2 * C * H * 2                    # Wfc+Wproj bf16, 2x-buffered
            b += 2 * (H + C) * 4                      # biases
        else:
            b += 2 * (C * bh + bh * C) * 2            # weight chunks bf16, 2x-buffered
            b += 2 * (bh + C) * 4                     # bias chunks
        b += 2 * bm * C * 2                           # x tile (bf16), 2x-buffered
        b += 2 * bm * C * out_itemsize                # out tile, 2x-buffered
        b += bm * C * 4                               # f32 accumulator scratch
        b += bm * bh * 6                              # GELU intermediate f32 + bf16
        return b

    def _pick_bm(target):
        n_tiles = max(1, -(-M // target))
        return _round_up(-(-M // n_tiles), 8)

    if block_m is not None:
        bm = _round_up(block_m, 8)
        use_resident = (not force_chunked) and \
            _working_set(bm, block_h, True) <= VMEM_BUDGET
    else:
        # Resident path: ~512-row tiles keep >=2 row tiles for long sequences
        # (v7x megacore).  Chunked fallback: push block_m toward 1024 so the
        # re-streamed weights see >=~1000 FLOP/byte (MXU-bound on v6e/v7x).
        bm = _pick_bm(512)
        use_resident = (not force_chunked) and \
            _working_set(bm, block_h, True) <= VMEM_BUDGET
        if not use_resident:
            bm = _pick_bm(1024)
            while _working_set(bm, block_h, False) > VMEM_BUDGET and bm > 256:
                bm = max(256, _round_up(bm // 2, 8))

    # Pad the row dimension so ragged token counts work (rows are independent).
    M_pad = _round_up(M, bm)
    if M_pad != M:
        x2 = jnp.pad(x2, ((0, M_pad - M), (0, 0)))

    ws = _working_set(bm, block_h, use_resident)
    vmem_limit = int(min(max(int(ws * 1.25) + (2 << 20), 4 << 20), 64 << 20))

    if use_resident:
        grid = (M_pad // bm,)
        kernel = functools.partial(_mlp_resident_kernel, block_h=block_h)
        in_specs = [
            pl.BlockSpec((bm, C), lambda i: (i, 0)),      # x row tile
            pl.BlockSpec((C, H), lambda i: (0, 0)),       # full Wfc, resident
            pl.BlockSpec((1, H), lambda i: (0, 0)),       # full bfc
            pl.BlockSpec((H, C), lambda i: (0, 0)),       # full Wproj, resident
            pl.BlockSpec((1, C), lambda i: (0, 0)),       # bproj
        ]
        out_specs = pl.BlockSpec((bm, C), lambda i: (i, 0))
        dim_sem = ("parallel",)
    else:
        grid = (M_pad // bm, H // block_h)
        kernel = _mlp_chunked_kernel
        in_specs = [
            pl.BlockSpec((bm, C), lambda i, h: (i, 0)),        # x (held across h)
            pl.BlockSpec((C, block_h), lambda i, h: (0, h)),   # Wfc chunk
            pl.BlockSpec((1, block_h), lambda i, h: (0, h)),   # bfc chunk
            pl.BlockSpec((block_h, C), lambda i, h: (h, 0)),   # Wproj chunk
            pl.BlockSpec((1, C), lambda i, h: (0, 0)),         # bproj
        ]
        out_specs = pl.BlockSpec((bm, C), lambda i, h: (i, 0))
        dim_sem = ("parallel", "arbitrary")

    out = pl.pallas_call(
        kernel,
        out_shape=jax.ShapeDtypeStruct((M_pad, C), orig_dtype),
        grid_spec=pltpu.PrefetchScalarGridSpec(
            num_scalar_prefetch=0,
            grid=grid,
            in_specs=in_specs,
            out_specs=out_specs,
            scratch_shapes=[pltpu.VMEM((bm, C), jnp.float32)],
        ),
        compiler_params=pltpu.CompilerParams(
            dimension_semantics=dim_sem,
            vmem_limit_bytes=vmem_limit,
        ),
    )(x2, wfc_bf, bfc2, wproj_bf, bproj2)

    if M_pad != M:
        out = out[:M]
    return out.reshape(orig_shape)


# ------------------------- pure-JAX reference check -------------------------

def mlp_ref(x, wfc, bfc, wproj, bproj):
    f = jax.nn.gelu(x @ wfc + bfc, approximate=False)
    return f @ wproj + bproj


# ----------------------------------- main ------------------------------------

if __name__ == "__main__":
    B, T, C = 2, 8, 64          # small shapes; n_embd = 64, hidden = 256
    H = 4 * C

    key = jax.random.PRNGKey(0)
    k1, k2, k3, k4, k5 = jax.random.split(key, 5)

    x = jax.random.normal(k1, (B, T, C), jnp.float32)
    # Linear weights stored as (in, out) == torch_weight.T
    wfc = 0.02 * jax.random.normal(k2, (C, H), jnp.float32)
    bfc = 0.01 * jax.random.normal(k3, (H,), jnp.float32)
    wproj = 0.02 * jax.random.normal(k4, (H, C), jnp.float32)
    bproj = 0.01 * jax.random.normal(k5, (C,), jnp.float32)

    ref = mlp_ref(x, wfc, bfc, wproj, bproj)

    # Path A: weight-resident kernel, block_h=128 -> 2 inner hidden chunks.
    out_res = jax.block_until_ready(
        mlp_pallas(x, wfc, bfc, wproj, bproj, block_h=128))

    # Path B: chunked fallback, 2 hidden grid steps (reduction axis).
    out_chk = jax.block_until_ready(
        mlp_pallas(x, wfc, bfc, wproj, bproj, block_h=128, force_chunked=True))

    # Ragged row count (M = 10, not a multiple of 8) -> exercises row padding.
    x_rag = x[:, :5, :]
    out_rag = jax.block_until_ready(mlp_pallas(x_rag, wfc, bfc, wproj, bproj))
    ref_rag = mlp_ref(x_rag, wfc, bfc, wproj, bproj)

    for out, r in ((out_res, ref), (out_chk, ref), (out_rag, ref_rag)):
        assert out.shape == r.shape
        max_err = float(jnp.max(jnp.abs(out - r)))
        # bf16 matmul inputs + approx erf/reciprocal vs f32 reference.
        assert max_err < 2e-2, max_err

    print("KERNEL_OK")
</pallas_src>

<mosaic_0001>
module attributes {stable_mosaic.version = 11 : i64} {
  func.func @_mlp_resident_kernel(%arg0: i32, %arg1: memref<16x64xbf16, #tpu.memory_space<vmem>>, %arg2: memref<64x256xbf16, #tpu.memory_space<vmem>>, %arg3: memref<1x256xf32, #tpu.memory_space<vmem>>, %arg4: memref<256x64xbf16, #tpu.memory_space<vmem>>, %arg5: memref<1x64xf32, #tpu.memory_space<vmem>>, %arg6: memref<16x64xf32, #tpu.memory_space<vmem>>, %arg7: memref<16x64xf32, #tpu.memory_space<vmem>>) attributes {dimension_semantics = [#tpu.dimension_semantics<parallel>], iteration_bounds = array<i64: 1>, scalar_prefetch = 0 : i64, scratch_operands = 1 : i64, tpu.core_type = #tpu.core_type<tc>, window_params = [{transform_indices = @transform_0, window_bounds = array<i64: 16, 64>}, {pipeline_mode = #tpu.pipeline_mode<synchronous>, transform_indices = @transform_1, window_bounds = array<i64: 64, 256>}, {pipeline_mode = #tpu.pipeline_mode<synchronous>, transform_indices = @transform_2, window_bounds = array<i64: 1, 256>}, {pipeline_mode = #tpu.pipeline_mode<synchronous>, transform_indices = @transform_3, window_bounds = array<i64: 256, 64>}, {pipeline_mode = #tpu.pipeline_mode<synchronous>, transform_indices = @transform_4, window_bounds = array<i64: 1, 64>}, {transform_indices = @transform_5, window_bounds = array<i64: 16, 64>}]} {
    %cst = arith.constant 0.000000e+00 : f32
    %0 = vector.broadcast %cst : f32 to vector<16x64xf32>
    %c0 = arith.constant 0 : index
    %c0_0 = arith.constant 0 : index
    %1 = vector.load %arg7[%c0, %c0_0] : memref<16x64xf32, #tpu.memory_space<vmem>>, vector<16x64xf32>
    tpu.vector_store %arg7[%c0, %c0_0], %0 {strides = array<i32>} : memref<16x64xf32, #tpu.memory_space<vmem>>, vector<16x64xf32>,
    %c0_1 = arith.constant 0 : index
    %c0_2 = arith.constant 0 : index
    %2 = vector.load %arg1[%c0_1, %c0_2] : memref<16x64xbf16, #tpu.memory_space<vmem>>, vector<16x64xbf16>
    %c0_3 = arith.constant 0 : index
    %c0_4 = arith.constant 0 : index
    %3 = vector.load %arg2[%c0_3, %c0_4] : memref<64x256xbf16, #tpu.memory_space<vmem>>, vector<64x128xbf16>
    %cst_5 = arith.constant dense<0.000000e+00> : vector<16x128xf32>
    %4 = tpu.matmul %2, %3, %cst_5 {dimension_numbers = #tpu.dot_dimension_numbers<[1], [0], [0], [1], [0, 0, 1, 1], [], []>} : vector<16x64xbf16>, vector<64x128xbf16>, vector<16x128xf32> -> vector<16x128xf32>
    %c0_6 = arith.constant 0 : index
    %c0_7 = arith.constant 0 : index
    %5 = vector.load %arg3[%c0_6, %c0_7] : memref<1x256xf32, #tpu.memory_space<vmem>>, vector<1x128xf32>
    %6 = vector.broadcast %5 : vector<1x128xf32> to vector<16x128xf32>
    %7 = arith.addf %4, %6 : vector<16x128xf32>
    %cst_8 = arith.constant 5.000000e-01 : f32
    %8 = vector.broadcast %cst_8 : f32 to vector<16x128xf32>
    %9 = arith.mulf %8, %7 : vector<16x128xf32>
    %cst_9 = arith.constant 0.707106769 : f32
    %10 = vector.broadcast %cst_9 : f32 to vector<16x128xf32>
    %11 = arith.mulf %7, %10 : vector<16x128xf32>
    %cst_10 = arith.constant 0.000000e+00 : f32
    %12 = vector.broadcast %cst_10 : f32 to vector<16x128xf32>
    %13 = arith.cmpf oge, %11, %12 : vector<16x128xf32>
    %cst_11 = arith.constant 1.000000e+00 : f32
    %cst_12 = arith.constant -1.000000e+00 : f32
    %14 = vector.broadcast %cst_11 : f32 to vector<16x128xf32>
    %15 = vector.broadcast %cst_12 : f32 to vector<16x128xf32>
    %16 = arith.select %13, %14, %15 : vector<16x128xi1>, vector<16x128xf32>
    %17 = math.absf %11 : vector<16x128xf32>
    %cst_13 = arith.constant 0.327591091 : f32
    %18 = vector.broadcast %cst_13 : f32 to vector<16x128xf32>
    %19 = arith.mulf %18, %17 : vector<16x128xf32>
    %cst_14 = arith.constant 1.000000e+00 : f32
    %20 = vector.broadcast %cst_14 : f32 to vector<16x128xf32>
    %21 = arith.addf %20, %19 : vector<16x128xf32>
    %22 = tpu.reciprocal %21 {approx = true} : vector<16x128xf32> -> vector<16x128xf32>
    %cst_15 = arith.constant 1.06140542 : f32
    %23 = vector.broadcast %cst_15 : f32 to vector<16x128xf32>
    %24 = arith.mulf %23, %22 : vector<16x128xf32>
    %cst_16 = arith.constant -1.45315206 : f32
    %25 = vector.broadcast %cst_16 : f32 to vector<16x128xf32>
    %26 = arith.addf %24, %25 : vector<16x128xf32>
    %27 = arith.mulf %26, %22 : vector<16x128xf32>
    %cst_17 = arith.constant 1.42141378 : f32
    %28 = vector.broadcast %cst_17 : f32 to vector<16x128xf32>
    %29 = arith.addf %27, %28 : vector<16x128xf32>
    %30 = arith.mulf %29, %22 : vector<16x128xf32>
    %cst_18 = arith.constant -0.284496725 : f32
    %31 = vector.broadcast %cst_18 : f32 to vector<16x128xf32>
    %32 = arith.addf %30, %31 : vector<16x128xf32>
    %33 = arith.mulf %32, %22 : vector<16x128xf32>
    %cst_19 = arith.constant 0.254829586 : f32
    %34 = vector.broadcast %cst_19 : f32 to vector<16x128xf32>
    %35 = arith.addf %33, %34 : vector<16x128xf32>
    %36 = arith.mulf %35, %22 : vector<16x128xf32>
    %cst_20 = arith.constant 0.000000e+00 : f32
    %37 = vector.broadcast %cst_20 : f32 to vector<16x128xf32>
    %38 = arith.subf %37, %17 : vector<16x128xf32>
    %39 = arith.mulf %38, %17 : vector<16x128xf32>
    %40 = math.exp %39 : vector<16x128xf32>
    %41 = arith.mulf %36, %40 : vector<16x128xf32>
    %cst_21 = arith.constant 1.000000e+00 : f32
    %42 = vector.broadcast %cst_21 : f32 to vector<16x128xf32>
    %43 = arith.subf %42, %41 : vector<16x128xf32>
    %44 = arith.mulf %16, %43 : vector<16x128xf32>
    %cst_22 = arith.constant 1.000000e+00 : f32
    %45 = vector.broadcast %cst_22 : f32 to vector<16x128xf32>
    %46 = arith.addf %45, %44 : vector<16x128xf32>
    %47 = arith.mulf %9, %46 : vector<16x128xf32>
    %c0_23 = arith.constant 0 : index
    %c0_24 = arith.constant 0 : index
    %48 = vector.load %arg7[%c0_23, %c0_24] : memref<16x64xf32, #tpu.memory_space<vmem>>, vector<16x64xf32>
    %49 = arith.truncf %47 : vector<16x128xf32> to vector<16x128xbf16>
    %c0_25 = arith.constant 0 : index
    %c0_26 = arith.constant 0 : index
    %50 = vector.load %arg4[%c0_25, %c0_26] : memref<256x64xbf16, #tpu.memory_space<vmem>>, vector<128x64xbf16>
    %cst_27 = arith.constant dense<0.000000e+00> : vector<16x64xf32>
    %51 = tpu.matmul %49, %50, %cst_27 {dimension_numbers = #tpu.dot_dimension_numbers<[1], [0], [0], [1], [0, 0, 1, 1], [], []>} : vector<16x128xbf16>, vector<128x64xbf16>, vector<16x64xf32> -> vector<16x64xf32>
    %52 = arith.addf %48, %51 : vector<16x64xf32>
    %c0_28 = arith.constant 0 : index
    %c0_29 = arith.constant 0 : index
    %53 = vector.load %arg7[%c0_28, %c0_29] : memref<16x64xf32, #tpu.memory_space<vmem>>, vector<16x64xf32>
    tpu.vector_store %arg7[%c0_28, %c0_29], %52 {strides = array<i32>} : memref<16x64xf32, #tpu.memory_space<vmem>>, vector<16x64xf32>,
    %c0_30 = arith.constant 0 : index
    %c128 = arith.constant 128 : index
    %54 = vector.load %arg2[%c0_30, %c128] : memref<64x256xbf16, #tpu.memory_space<vmem>>, vector<64x128xbf16>
    %cst_31 = arith.constant dense<0.000000e+00> : vector<16x128xf32>
    %55 = tpu.matmul %2, %54, %cst_31 {dimension_numbers = #tpu.dot_dimension_numbers<[1], [0], [0], [1], [0, 0, 1, 1], [], []>} : vector<16x64xbf16>, vector<64x128xbf16>, vector<16x128xf32> -> vector<16x128xf32>
    %c0_32 = arith.constant 0 : index
    %c128_33 = arith.constant 128 : index
    %56 = vector.load %arg3[%c0_32, %c128_33] : memref<1x256xf32, #tpu.memory_space<vmem>>, vector<1x128xf32>
    %57 = vector.broadcast %56 : vector<1x128xf32> to vector<16x128xf32>
    %58 = arith.addf %55, %57 : vector<16x128xf32>
    %cst_34 = arith.constant 5.000000e-01 : f32
    %59 = vector.broadcast %cst_34 : f32 to vector<16x128xf32>
    %60 = arith.mulf %59, %58 : vector<16x128xf32>
    %cst_35 = arith.constant 0.707106769 : f32
    %61 = vector.broadcast %cst_35 : f32 to vector<16x128xf32>
    %62 = arith.mulf %58, %61 : vector<16x128xf32>
    %cst_36 = arith.constant 0.000000e+00 : f32
    %63 = vector.broadcast %cst_36 : f32 to vector<16x128xf32>
    %64 = arith.cmpf oge, %62, %63 : vector<16x128xf32>
    %cst_37 = arith.constant 1.000000e+00 : f32
    %cst_38 = arith.constant -1.000000e+00 : f32
    %65 = vector.broadcast %cst_37 : f32 to vector<16x128xf32>
    %66 = vector.broadcast %cst_38 : f32 to vector<16x128xf32>
    %67 = arith.select %64, %65, %66 : vector<16x128xi1>, vector<16x128xf32>
    %68 = math.absf %62 : vector<16x128xf32>
    %cst_39 = arith.constant 0.327591091 : f32
    %69 = vector.broadcast %cst_39 : f32 to vector<16x128xf32>
    %70 = arith.mulf %69, %68 : vector<16x128xf32>
    %cst_40 = arith.constant 1.000000e+00 : f32
    %71 = vector.broadcast %cst_40 : f32 to vector<16x128xf32>
    %72 = arith.addf %71, %70 : vector<16x128xf32>
    %73 = tpu.reciprocal %72 {approx = true} : vector<16x128xf32> -> vector<16x128xf32>
    %cst_41 = arith.constant 1.06140542 : f32
    %74 = vector.broadcast %cst_41 : f32 to vector<16x128xf32>
    %75 = arith.mulf %74, %73 : vector<16x128xf32>
    %cst_42 = arith.constant -1.45315206 : f32
    %76 = vector.broadcast %cst_42 : f32 to vector<16x128xf32>
    %77 = arith.addf %75, %76 : vector<16x128xf32>
    %78 = arith.mulf %77, %73 : vector<16x128xf32>
    %cst_43 = arith.constant 1.42141378 : f32
    %79 = vector.broadcast %cst_43 : f32 to vector<16x128xf32>
    %80 = arith.addf %78, %79 : vector<16x128xf32>
    %81 = arith.mulf %80, %73 : vector<16x128xf32>
    %cst_44 = arith.constant -0.284496725 : f32
    %82 = vector.broadcast %cst_44 : f32 to vector<16x128xf32>
    %83 = arith.addf %81, %82 : vector<16x128xf32>
    %84 = arith.mulf %83, %73 : vector<16x128xf32>
    %cst_45 = arith.constant 0.254829586 : f32
    %85 = vector.broadcast %cst_45 : f32 to vector<16x128xf32>
    %86 = arith.addf %84, %85 : vector<16x128xf32>
    %87 = arith.mulf %86, %73 : vector<16x128xf32>
    %cst_46 = arith.constant 0.000000e+00 : f32
    %88 = vector.broadcast %cst_46 : f32 to vector<16x128xf32>
    %89 = arith.subf %88, %68 : vector<16x128xf32>
    %90 = arith.mulf %89, %68 : vector<16x128xf32>
    %91 = math.exp %90 : vector<16x128xf32>
    %92 = arith.mulf %87, %91 : vector<16x128xf32>
    %cst_47 = arith.constant 1.000000e+00 : f32
    %93 = vector.broadcast %cst_47 : f32 to vector<16x128xf32>
    %94 = arith.subf %93, %92 : vector<16x128xf32>
    %95 = arith.mulf %67, %94 : vector<16x128xf32>
    %cst_48 = arith.constant 1.000000e+00 : f32
    %96 = vector.broadcast %cst_48 : f32 to vector<16x128xf32>
    %97 = arith.addf %96, %95 : vector<16x128xf32>
    %98 = arith.mulf %60, %97 : vector<16x128xf32>
    %c0_49 = arith.constant 0 : index
    %c0_50 = arith.constant 0 : index
    %99 = vector.load %arg7[%c0_49, %c0_50] : memref<16x64xf32, #tpu.memory_space<vmem>>, vector<16x64xf32>
    %100 = arith.truncf %98 : vector<16x128xf32> to vector<16x128xbf16>
    %c128_51 = arith.constant 128 : index
    %c0_52 = arith.constant 0 : index
    %101 = vector.load %arg4[%c128_51, %c0_52] : memref<256x64xbf16, #tpu.memory_space<vmem>>, vector<128x64xbf16>
    %cst_53 = arith.constant dense<0.000000e+00> : vector<16x64xf32>
    %102 = tpu.matmul %100, %101, %cst_53 {dimension_numbers = #tpu.dot_dimension_numbers<[1], [0], [0], [1], [0, 0, 1, 1], [], []>} : vector<16x128xbf16>, vector<128x64xbf16>, vector<16x64xf32> -> vector<16x64xf32>
    %103 = arith.addf %99, %102 : vector<16x64xf32>
    %c0_54 = arith.constant 0 : index
    %c0_55 = arith.constant 0 : index
    %104 = vector.load %arg7[%c0_54, %c0_55] : memref<16x64xf32, #tpu.memory_space<vmem>>, vector<16x64xf32>
    tpu.vector_store %arg7[%c0_54, %c0_55], %103 {strides = array<i32>} : memref<16x64xf32, #tpu.memory_space<vmem>>, vector<16x64xf32>,
    %c0_56 = arith.constant 0 : index
    %c0_57 = arith.constant 0 : index
    %105 = vector.load %arg7[%c0_56, %c0_57] : memref<16x64xf32, #tpu.memory_space<vmem>>, vector<16x64xf32>
    %c0_58 = arith.constant 0 : index
    %c0_59 = arith.constant 0 : index
    %106 = vector.load %arg5[%c0_58, %c0_59] : memref<1x64xf32, #tpu.memory_space<vmem>>, vector<1x64xf32>
    %107 = vector.broadcast %106 : vector<1x64xf32> to vector<16x64xf32>
    %108 = arith.addf %105, %107 : vector<16x64xf32>
    %c0_60 = arith.constant 0 : index
    %c0_61 = arith.constant 0 : index
    %109 = vector.load %arg6[%c0_60, %c0_61] : memref<16x64xf32, #tpu.memory_space<vmem>>, vector<16x64xf32>
    tpu.vector_store %arg6[%c0_60, %c0_61], %108 {strides = array<i32>} : memref<16x64xf32, #tpu.memory_space<vmem>>, vector<16x64xf32>,
    return
  }
  func.func @transform_0(%arg0: i32) -> (i32, i32) {
    %c0_i32 = arith.constant 0 : i32
    %c0_i32_0 = arith.constant 0 : i32
    return %arg0, %c0_i32 : i32, i32
  }
  func.func @transform_1(%arg0: i32) -> (i32, i32) {
    %c0_i32 = arith.constant 0 : i32
    %c0_i32_0 = arith.constant 0 : i32
    %c0_i32_1 = arith.constant 0 : i32
    return %c0_i32, %c0_i32_0 : i32, i32
  }
  func.func @transform_2(%arg0: i32) -> (i32, i32) {
    %c0_i32 = arith.constant 0 : i32
    %c0_i32_0 = arith.constant 0 : i32
    %c0_i32_1 = arith.constant 0 : i32
    return %c0_i32, %c0_i32_0 : i32, i32
  }
  func.func @transform_3(%arg0: i32) -> (i32, i32) {
    %c0_i32 = arith.constant 0 : i32
    %c0_i32_0 = arith.constant 0 : i32
    %c0_i32_1 = arith.constant 0 : i32
    return %c0_i32, %c0_i32_0 : i32, i32
  }
  func.func @transform_4(%arg0: i32) -> (i32, i32) {
    %c0_i32 = arith.constant 0 : i32
    %c0_i32_0 = arith.constant 0 : i32
    %c0_i32_1 = arith.constant 0 : i32
    return %c0_i32, %c0_i32_0 : i32, i32
  }
  func.func @transform_5(%arg0: i32) -> (i32, i32) {
    %c0_i32 = arith.constant 0 : i32
    %c0_i32_0 = arith.constant 0 : i32
    return %arg0, %c0_i32 : i32, i32
  }
}

</mosaic_0001>

<llo_original>
// kernel: tpu_custom_call.1
$region0: #{tpu_custom_call.1}
  #allocation0 [shape = 'u32[]', space=smem, size = 0x4, offset = 0x4, fixed_abs, tag = 'smem constant byte address 0x4 - core index']
  #allocation1 [shape = 'u32[144,128]{1,0:T(1,128)}', space=vmem, size = 0x12000, scoped, tag = 'internal scratch']
  #allocation2 [shape = 'f32[16,64]{1,0:T(8,128)}', space=vmem, size = 0x2000, scoped, tag = 'scratch operand']
  %s0 = inlined_call_operand.vmem [shape: bf16[16,64], index: 0, kind: input, shape index: {}]
  %s1 = inlined_call_operand.vmem [shape: bf16[64,256], index: 1, kind: input, shape index: {}]
  %s2 = inlined_call_operand.vmem [shape: f32[1,256], index: 2, kind: input, shape index: {}]
  %s3 = inlined_call_operand.vmem [shape: bf16[256,64], index: 3, kind: input, shape index: {}]
  %s4 = inlined_call_operand.vmem [shape: f32[1,64], index: 4, kind: input, shape index: {}]
  %s5 = inlined_call_operand.hbm [shape: f32[16,64], index: 5, kind: output, shape index: {}]
  %s6 = sld [smem:[#allocation0]]
  $region30: #{tpu_custom_call.1} parent=0
    _
  %s8 = ssub.s32 1, %s6
  %s9 = scalar_select 0, %s8, %s6
  $region1: #{tpu_custom_call.1} parent=0
    #allocation3 [shape = 'u8[8192]{0}', space=vmem, size = 0x2000, scoped, tag = 'output window, operand 0, single buffered']
    #allocation4 [shape = 's32[1]{0}', space=sflag, size = 0x4, scoped, tag = 'scoped memory for tpu_custom_call.1']
    %10 = vsyncpa [#allocation4], 0
    // Predicated region
    $region2: #{tpu_custom_call.1} parent=1 // pred_check
      _
    $region3: #{tpu_custom_call.1} parent=1 // pred_check_branch
      %12 = sbr.rel (0) target = $region5
    $region4: #{tpu_custom_call.1} parent=1 // pred_region
      _
    $region5: #{tpu_custom_call.1} parent=1 // pred_fallthru
      _
    // Predicated region
    $region6: #{tpu_custom_call.1} parent=1 // pred_check
      _
    $region7: #{tpu_custom_call.1} parent=1 // pred_check_branch
      %14 = sbr.rel (0) target = $region9
    $region8: #{tpu_custom_call.1} parent=1 // pred_region
      _
    $region9: #{tpu_custom_call.1} parent=1 // pred_fallthru
      _
    // Predicated region
    $region10: #{tpu_custom_call.1} parent=1 // pred_check
      _
    $region11: #{tpu_custom_call.1} parent=1 // pred_check_branch
      %16 = sbr.rel (0) target = $region13
    $region12: #{tpu_custom_call.1} parent=1 // pred_region
      _
    $region13: #{tpu_custom_call.1} parent=1 // pred_fallthru
      _
    // Predicated region
    $region14: #{tpu_custom_call.1} parent=1 // pred_check
      _
    $region15: #{tpu_custom_call.1} parent=1 // pred_check_branch
      %18 = sbr.rel (0) target = $region17
    $region16: #{tpu_custom_call.1} parent=1 // pred_region
      _
    $region17: #{tpu_custom_call.1} parent=1 // pred_fallthru
      _
    // Predicated region
    $region18: #{tpu_custom_call.1} parent=1 // pred_check
      _
    $region19: #{tpu_custom_call.1} parent=1 // pred_check_branch
      %20 = sbr.rel (0) target = $region21
    $region20: #{tpu_custom_call.1} parent=1 // pred_region
      _
    $region21: #{tpu_custom_call.1} parent=1 // pred_fallthru
      _
    %vm22 = vcmask 523264
    %23 = vst.msk [vmem:[#allocation2] sm:$0xff] %vm22, 0.0
    %24 = vst.msk [vmem:[#allocation2 + $0x8] sm:$0xff] %vm22, 0.0
    %v25 = vld [vmem:[%s0] sm:$0xf]
    %v26 = vld [vmem:[%s0 + $0x4] sm:$0xf]
    %v27 = vld [vmem:[%s1] sm:$0xf]
    %v28 = vld [vmem:[%s1 + $0x8] sm:$0xf]
    %v29 = vld [vmem:[%s1 + $0x10] sm:$0xf]
    %v30 = vld [vmem:[%s1 + $0x18] sm:$0xf]
    %v31 = vld [vmem:[%s1 + $0x20] sm:$0xf]
    %v32 = vld [vmem:[%s1 + $0x28] sm:$0xf]
    %v33 = vld [vmem:[%s1 + $0x30] sm:$0xf]
    %v34 = vld [vmem:[%s1 + $0x38] sm:$0xf]
    %v35 = vld [vmem:[%s2] sm:$0x1]
    %v37 = vlaneseq
    %v38 = vshrl.u32 %v37, 7
    %v39 = vsub.s32 0, %v38
    %v40 = vrot.slane %v35, %v39
    %v44 = vunpack.c.l.b16 %v25
    %v45 = vunpack.c.l.b16 %v26
    %v46 = vpack.c.b16 %v45, %v44
    %v55 = vunpack.c.l.b16 %v27
    %v56 = vunpack.c.l.b16 %v28
    %v57 = vunpack.c.l.b16 %v29
    %v58 = vunpack.c.l.b16 %v30
    %v59 = vunpack.c.l.b16 %v31
    %v60 = vunpack.c.l.b16 %v32
    %v61 = vunpack.c.l.b16 %v33
    %v62 = vunpack.c.l.b16 %v34
    %v63 = vpack.c.b16 %v56, %v55
    %v64 = vpack.c.b16 %v58, %v57
    %v65 = vpack.c.b16 %v60, %v59
    %v66 = vpack.c.b16 %v62, %v61
    %v72 = vsel %vm22, %v46, 0
    %74 = vmatprep.subr.bf16.mxu0 0
    %75 = vmatpush1.bf16.msra.mxu0 %v63
    %76 = vmatprep.subr.bf16.mxu0 0
    %77 = vmatpush1.bf16.msra.mxu0 %v64
    %78 = vmatprep.subr.bf16.mxu0 0
    %79 = vmatpush1.bf16.msra.mxu0 %v65
    %80 = vmatprep.subr.bf16.mxu0 0
    %81 = vmatpush1.bf16.msra.mxu0 %v66
    %82 = vmatprep.subr.bf16.mxu0 0
    %83 = vmatpush1.bf16.msra.mxu0 0
    %84 = vmatprep.subr.bf16.mxu0 0
    %85 = vmatpush1.bf16.msra.mxu0 0
    %86 = vmatprep.subr.bf16.mxu0 0
    %87 = vmatpush1.bf16.msra.mxu0 0
    %88 = vmatprep.subr.bf16.mxu0 0
    %89 = vmatpush1.bf16.msra.mxu0 0
    %90 = vmatprep.subr.bf16.mxu0 0
    %91 = vmatpush1.bf16.msra.mxu0 0
    %92 = vmatprep.subr.bf16.mxu0 0
    %93 = vmatpush1.bf16.msra.mxu0 0
    %94 = vmatprep.subr.bf16.mxu0 0
    %95 = vmatpush1.bf16.msra.mxu0 0
    %96 = vmatprep.subr.bf16.mxu0 0
    %97 = vmatpush1.bf16.msra.mxu0 0
    %98 = vmatprep.subr.bf16.mxu0 0
    %99 = vmatpush1.bf16.msra.mxu0 0
    %100 = vmatprep.subr.bf16.mxu0 0
    %101 = vmatpush1.bf16.msra.mxu0 0
    %102 = vmatprep.subr.bf16.mxu0 0
    %103 = vmatpush1.bf16.msra.mxu0 0
    %104 = vmatprep.subr.bf16.mxu0 0
    %105 = vmatpush1.bf16.msra.mxu0 0
    %106 = vmatprep.mubr.bf16.mxu0 0
    %107 = vmatmul.mubr.bf16.gmra.mrb[0].mxu0 %v72
    %v108 = vpop.f32.mrb[0].mxu0
    %v109 = vadd.f32 %v40, %v108
    %v110 = vpop.f32.mrb[0].mxu0
    %v111 = vpop.f32.mrb[0].mxu0
    %v112 = vadd.f32 %v40, %v111
    %v113 = vpop.f32.mrb[0].mxu0
    %114 = vdwg.mxu0
    %v115 = vmul.f32 %v109, 0.5
    %v116 = vmul.f32 %v112, 0.5
    %v117 = vmul.f32 %v109, 0.70710677
    %v118 = vmul.f32 %v112, 0.70710677
    %vm119 = vcmp.ge.f32.partialorder %v117, 0.0
    %vm120 = vcmp.ge.f32.partialorder %v118, 0.0
    %v121 = vsel %vm119, 1.0, -1.0
    %v122 = vsel %vm120, 1.0, -1.0
    %v123 = vand.u32 2147483647, %v117
    %v124 = vand.u32 2147483647, %v118
    %v125 = vmul.f32 %v123, 0.3275911
    %v126 = vmul.f32 %v124, 0.3275911
    %v127 = vadd.f32 %v125, 1.0
    %v128 = vadd.f32 %v126, 1.0
    %v129 = vrcp.pop %v127
    %v130 = vrcp.pop %v128
    %v131 = vmul.f32 %v129, 1.0614054
    %v132 = vmul.f32 %v130, 1.0614054
    %v133 = vadd.f32 %v131, -1.4531521
    %v134 = vadd.f32 %v132, -1.4531521
    %v135 = vmul.f32 %v133, %v129
    %v136 = vmul.f32 %v134, %v130
    %v137 = vadd.f32 %v135, 1.4214138
    %v138 = vadd.f32 %v136, 1.4214138
    %v139 = vmul.f32 %v137, %v129
    %v140 = vmul.f32 %v138, %v130
    %v141 = vadd.f32 %v139, -0.28449672
    %v142 = vadd.f32 %v140, -0.28449672
    %v143 = vmul.f32 %v141, %v129
    %v144 = vmul.f32 %v142, %v130
    %v145 = vadd.f32 %v143, 0.2548296
    %v146 = vadd.f32 %v144, 0.2548296
    %v147 = vmul.f32 %v145, %v129
    %v148 = vmul.f32 %v146, %v130
    %v149 = vsub.f32 0.0, %v123
    %v150 = vsub.f32 0.0, %v124
    %v151 = vmul.f32 %v149, %v123
    %v152 = vmul.f32 %v150, %v124
    %v153 = vmul.f32 %v151, 1.442695
    %v154 = vpow.pop %v153
    %v155 = vmul.f32 %v152, 1.442695
    %v156 = vpow.pop %v155
    %v157 = vmul.f32 %v147, %v154
    %v158 = vmul.f32 %v148, %v156
    %v159 = vsub.f32 1.0, %v157
    %v160 = vsub.f32 1.0, %v158
    %v161 = vmul.f32 %v121, %v159
    %v162 = vmul.f32 %v122, %v160
    %v163 = vadd.f32 %v161, 1.0
    %v164 = vadd.f32 %v162, 1.0
    %v165 = vmul.f32 %v115, %v163
    %v166 = vmul.f32 %v116, %v164
    %v167 = vld [vmem:[#allocation2] sm:$0xff]
    %v168 = vld [vmem:[#allocation2 + $0x8] sm:$0xff]
    %v169 = vpack.c.bf16 %v166, %v165
    %v170 = vld [vmem:[%s3] sm:$0xf]
    %v171 = vld [vmem:[%s3 + $0x4] sm:$0xf]
    %v172 = vld [vmem:[%s3 + $0x8] sm:$0xf]
    %v173 = vld [vmem:[%s3 + $0xc] sm:$0xf]
    %v174 = vld [vmem:[%s3 + $0x10] sm:$0xf]
    %v175 = vld [vmem:[%s3 + $0x14] sm:$0xf]
    %v176 = vld [vmem:[%s3 + $0x18] sm:$0xf]
    %v177 = vld [vmem:[%s3 + $0x1c] sm:$0xf]
    %v178 = vld [vmem:[%s3 + $0x20] sm:$0xf]
    %v179 = vld [vmem:[%s3 + $0x24] sm:$0xf]
    %v180 = vld [vmem:[%s3 + $0x28] sm:$0xf]
    %v181 = vld [vmem:[%s3 + $0x2c] sm:$0xf]
    %v182 = vld [vmem:[%s3 + $0x30] sm:$0xf]
    %v183 = vld [vmem:[%s3 + $0x34] sm:$0xf]
    %v184 = vld [vmem:[%s3 + $0x38] sm:$0xf]
    %v185 = vld [vmem:[%s3 + $0x3c] sm:$0xf]
    %v202 = vunpack.c.l.b16 %v170
    %v203 = vunpack.c.l.b16 %v171
    %v204 = vunpack.c.l.b16 %v172
    %v205 = vunpack.c.l.b16 %v173
    %v206 = vunpack.c.l.b16 %v174
    %v207 = vunpack.c.l.b16 %v175
    %v208 = vunpack.c.l.b16 %v176
    %v209 = vunpack.c.l.b16 %v177
    %v210 = vunpack.c.l.b16 %v178
    %v211 = vunpack.c.l.b16 %v179
    %v212 = vunpack.c.l.b16 %v180
    %v213 = vunpack.c.l.b16 %v181
    %v214 = vunpack.c.l.b16 %v182
    %v215 = vunpack.c.l.b16 %v183
    %v216 = vunpack.c.l.b16 %v184
    %v217 = vunpack.c.l.b16 %v185
    %v218 = vpack.c.b16 %v203, %v202
    %v219 = vpack.c.b16 %v205, %v204
    %v220 = vpack.c.b16 %v207, %v206
    %v221 = vpack.c.b16 %v209, %v208
    %v222 = vpack.c.b16 %v211, %v210
    %v223 = vpack.c.b16 %v213, %v212
    %v224 = vpack.c.b16 %v215, %v214
    %v225 = vpack.c.b16 %v217, %v216
    %234 = vmatprep.subr.bf16.mxu0 0
    %235 = vmatpush1.bf16.msra.mxu0 %v218
    %236 = vmatprep.subr.bf16.mxu0 0
    %237 = vmatpush1.bf16.msra.mxu0 %v219
    %238 = vmatprep.subr.bf16.mxu0 0
    %239 = vmatpush1.bf16.msra.mxu0 %v220
    %240 = vmatprep.subr.bf16.mxu0 0
    %241 = vmatpush1.bf16.msra.mxu0 %v221
    %242 = vmatprep.subr.bf16.mxu0 0
    %243 = vmatpush1.bf16.msra.mxu0 %v222
    %244 = vmatprep.subr.bf16.mxu0 0
    %245 = vmatpush1.bf16.msra.mxu0 %v223
    %246 = vmatprep.subr.bf16.mxu0 0
    %247 = vmatpush1.bf16.msra.mxu0 %v224
    %248 = vmatprep.subr.bf16.mxu0 0
    %249 = vmatpush1.bf16.msra.mxu0 %v225
    %250 = vmatprep.subr.bf16.mxu0 0
    %251 = vmatpush1.bf16.msra.mxu0 0
    %252 = vmatprep.subr.bf16.mxu0 0
    %253 = vmatpush1.bf16.msra.mxu0 0
    %254 = vmatprep.subr.bf16.mxu0 0
    %255 = vmatpush1.bf16.msra.mxu0 0
    %256 = vmatprep.subr.bf16.mxu0 0
    %257 = vmatpush1.bf16.msra.mxu0 0
    %258 = vmatprep.subr.bf16.mxu0 0
    %259 = vmatpush1.bf16.msra.mxu0 0
    %260 = vmatprep.subr.bf16.mxu0 0
    %261 = vmatpush1.bf16.msra.mxu0 0
    %262 = vmatprep.subr.bf16.mxu0 0
    %263 = vmatpush1.bf16.msra.mxu0 0
    %264 = vmatprep.subr.bf16.mxu0 0
    %265 = vmatpush1.bf16.msra.mxu0 0
    %266 = vmatprep.mubr.bf16.mxu0 0
    %267 = vmatmul.mubr.bf16.gmra.mrb[0].mxu0 %v169
    %v268 = vpop.f32.mrb[0].mxu0
    %v269 = vadd.f32 0.0, %v268
    %v270 = vpop.f32.mrb[0].mxu0
    %v271 = vpop.f32.mrb[0].mxu0
    %v272 = vadd.f32 0.0, %v271
    %v273 = vpop.f32.mrb[0].mxu0
    %274 = vdwg.mxu0
    %v275 = vadd.f32 %v167, %v269
    %v276 = vadd.f32 %v168, %v272
    %277 = vst.msk [vmem:[#allocation2] sm:$0xff] %vm22, %v275
    %278 = vst.msk [vmem:[#allocation2 + $0x8] sm:$0xff] %vm22, %v276
    %v279 = vld [vmem:[%s1 + $0x4] sm:$0xf]
    %v280 = vld [vmem:[%s1 + $0xc] sm:$0xf]
    %v281 = vld [vmem:[%s1 + $0x14] sm:$0xf]
    %v282 = vld [vmem:[%s1 + $0x1c] sm:$0xf]
    %v283 = vld [vmem:[%s1 + $0x24] sm:$0xf]
    %v284 = vld [vmem:[%s1 + $0x2c] sm:$0xf]
    %v285 = vld [vmem:[%s1 + $0x34] sm:$0xf]
    %v286 = vld [vmem:[%s1 + $0x3c] sm:$0xf]
    %v287 = vld [vmem:[%s2 + $0x1] sm:$0x1]
    %v289 = vlaneseq
    %v290 = vshrl.u32 %v289, 7
    %v291 = vsub.s32 0, %v290
    %v292 = vrot.slane %v287, %v291
    %v302 = vunpack.c.l.b16 %v279
    %v303 = vunpack.c.l.b16 %v280
    %v304 = vunpack.c.l.b16 %v281
    %v305 = vunpack.c.l.b16 %v282
    %v306 = vunpack.c.l.b16 %v283
    %v307 = vunpack.c.l.b16 %v284
    %v308 = vunpack.c.l.b16 %v285
    %v309 = vunpack.c.l.b16 %v286
    %v310 = vpack.c.b16 %v303, %v302
    %v311 = vpack.c.b16 %v305, %v304
    %v312 = vpack.c.b16 %v307, %v306
    %v313 = vpack.c.b16 %v309, %v308
    %318 = vmatprep.subr.bf16.mxu0 0
    %319 = vmatpush1.bf16.msra.mxu0 %v310
    %320 = vmatprep.subr.bf16.mxu0 0
    %321 = vmatpush1.bf16.msra.mxu0 %v311
    %322 = vmatprep.subr.bf16.mxu0 0
    %323 = vmatpush1.bf16.msra.mxu0 %v312
    %324 = vmatprep.subr.bf16.mxu0 0
    %325 = vmatpush1.bf16.msra.mxu0 %v313
    %326 = vmatprep.subr.bf16.mxu0 0
    %327 = vmatpush1.bf16.msra.mxu0 0
    %328 = vmatprep.subr.bf16.mxu0 0
    %329 = vmatpush1.bf16.msra.mxu0 0
    %330 = vmatprep.subr.bf16.mxu0 0
    %331 = vmatpush1.bf16.msra.mxu0 0
    %332 = vmatprep.subr.bf16.mxu0 0
    %333 = vmatpush1.bf16.msra.mxu0 0
    %334 = vmatprep.subr.bf16.mxu0 0
    %335 = vmatpush1.bf16.msra.mxu0 0
    %336 = vmatprep.subr.bf16.mxu0 0
    %337 = vmatpush1.bf16.msra.mxu0 0
    %338 = vmatprep.subr.bf16.mxu0 0
    %339 = vmatpush1.bf16.msra.mxu0 0
    %340 = vmatprep.subr.bf16.mxu0 0
    %341 = vmatpush1.bf16.msra.mxu0 0
    %342 = vmatprep.subr.bf16.mxu0 0
    %343 = vmatpush1.bf16.msra.mxu0 0
    %344 = vmatprep.subr.bf16.mxu0 0
    %345 = vmatpush1.bf16.msra.mxu0 0
    %346 = vmatprep.subr.bf16.mxu0 0
    %347 = vmatpush1.bf16.msra.mxu0 0
    %348 = vmatprep.subr.bf16.mxu0 0
    %349 = vmatpush1.bf16.msra.mxu0 0
    %350 = vmatprep.mubr.bf16.mxu0 0
    %351 = vmatmul.mubr.bf16.gmra.mrb[0].mxu0 %v72
    %v352 = vpop.f32.mrb[0].mxu0
    %v353 = vadd.f32 %v292, %v352
    %v354 = vpop.f32.mrb[0].mxu0
    %v355 = vpop.f32.mrb[0].mxu0
    %v356 = vadd.f32 %v292, %v355
    %v357 = vpop.f32.mrb[0].mxu0
    %358 = vdwg.mxu0
    %v359 = vmul.f32 %v353, 0.5
    %v360 = vmul.f32 %v356, 0.5
    %v361 = vmul.f32 %v353, 0.70710677
    %v362 = vmul.f32 %v356, 0.70710677
    %vm363 = vcmp.ge.f32.partialorder %v361, 0.0
    %vm364 = vcmp.ge.f32.partialorder %v362, 0.0
    %v365 = vsel %vm363, 1.0, -1.0
    %v366 = vsel %vm364, 1.0, -1.0
    %v367 = vand.u32 2147483647, %v361
    %v368 = vand.u32 2147483647, %v362
    %v369 = vmul.f32 %v367, 0.3275911
    %v370 = vmul.f32 %v368, 0.3275911
    %v371 = vadd.f32 %v369, 1.0
    %v372 = vadd.f32 %v370, 1.0
    %v373 = vrcp.pop %v371
    %v374 = vrcp.pop %v372
    %v375 = vmul.f32 %v373, 1.0614054
    %v376 = vmul.f32 %v374, 1.0614054
    %v377 = vadd.f32 %v375, -1.4531521
    %v378 = vadd.f32 %v376, -1.4531521
    %v379 = vmul.f32 %v377, %v373
    %v380 = vmul.f32 %v378, %v374
    %v381 = vadd.f32 %v379, 1.4214138
    %v382 = vadd.f32 %v380, 1.4214138
    %v383 = vmul.f32 %v381, %v373
    %v384 = vmul.f32 %v382, %v374
    %v385 = vadd.f32 %v383, -0.28449672
    %v386 = vadd.f32 %v384, -0.28449672
    %v387 = vmul.f32 %v385, %v373
    %v388 = vmul.f32 %v386, %v374
    %v389 = vadd.f32 %v387, 0.2548296
    %v390 = vadd.f32 %v388, 0.2548296
    %v391 = vmul.f32 %v389, %v373
    %v392 = vmul.f32 %v390, %v374
    %v393 = vsub.f32 0.0, %v367
    %v394 = vsub.f32 0.0, %v368
    %v395 = vmul.f32 %v393, %v367
    %v396 = vmul.f32 %v394, %v368
    %v397 = vmul.f32 %v395, 1.442695
    %v398 = vpow.pop %v397
    %v399 = vmul.f32 %v396, 1.442695
    %v400 = vpow.pop %v399
    %v401 = vmul.f32 %v391, %v398
    %v402 = vmul.f32 %v392, %v400
    %v403 = vsub.f32 1.0, %v401
    %v404 = vsub.f32 1.0, %v402
    %v405 = vmul.f32 %v365, %v403
    %v406 = vmul.f32 %v366, %v404
    %v407 = vadd.f32 %v405, 1.0
    %v408 = vadd.f32 %v406, 1.0
    %v409 = vmul.f32 %v359, %v407
    %v410 = vmul.f32 %v360, %v408
    %v411 = vld [vmem:[#allocation2] sm:$0xff]
    %v412 = vld [vmem:[#allocation2 + $0x8] sm:$0xff]
    %v413 = vpack.c.bf16 %v410, %v409
    %v414 = vld [vmem:[%s3 + $0x40] sm:$0xf]
    %v415 = vld [vmem:[%s3 + $0x44] sm:$0xf]
    %v416 = vld [vmem:[%s3 + $0x48] sm:$0xf]
    %v417 = vld [vmem:[%s3 + $0x4c] sm:$0xf]
    %v418 = vld [vmem:[%s3 + $0x50] sm:$0xf]
    %v419 = vld [vmem:[%s3 + $0x54] sm:$0xf]
    %v420 = vld [vmem:[%s3 + $0x58] sm:$0xf]
    %v421 = vld [vmem:[%s3 + $0x5c] sm:$0xf]
    %v422 = vld [vmem:[%s3 + $0x60] sm:$0xf]
    %v423 = vld [vmem:[%s3 + $0x64] sm:$0xf]
    %v424 = vld [vmem:[%s3 + $0x68] sm:$0xf]
    %v425 = vld [vmem:[%s3 + $0x6c] sm:$0xf]
    %v426 = vld [vmem:[%s3 + $0x70] sm:$0xf]
    %v427 = vld [vmem:[%s3 + $0x74] sm:$0xf]
    %v428 = vld [vmem:[%s3 + $0x78] sm:$0xf]
    %v429 = vld [vmem:[%s3 + $0x7c] sm:$0xf]
    %v446 = vunpack.c.l.b16 %v414
    %v447 = vunpack.c.l.b16 %v415
    %v448 = vunpack.c.l.b16 %v416
    %v449 = vunpack.c.l.b16 %v417
    %v450 = vunpack.c.l.b16 %v418
    %v451 = vunpack.c.l.b16 %v419
    %v452 = vunpack.c.l.b16 %v420
    %v453 = vunpack.c.l.b16 %v421
    %v454 = vunpack.c.l.b16 %v422
    %v455 = vunpack.c.l.b16 %v423
    %v456 = vunpack.c.l.b16 %v424
    %v457 = vunpack.c.l.b16 %v425
    %v458 = vunpack.c.l.b16 %v426
    %v459 = vunpack.c.l.b16 %v427
    %v460 = vunpack.c.l.b16 %v428
    %v461 = vunpack.c.l.b16 %v429
    %v462 = vpack.c.b16 %v447, %v446
    %v463 = vpack.c.b16 %v449, %v448
    %v464 = vpack.c.b16 %v451, %v450
    %v465 = vpack.c.b16 %v453, %v452
    %v466 = vpack.c.b16 %v455, %v454
    %v467 = vpack.c.b16 %v457, %v456
    %v468 = vpack.c.b16 %v459, %v458
    %v469 = vpack.c.b16 %v461, %v460
    %478 = vmatprep.subr.bf16.mxu0 0
    %479 = vmatpush1.bf16.msra.mxu0 %v462
    %480 = vmatprep.subr.bf16.mxu0 0
    %481 = vmatpush1.bf16.msra.mxu0 %v463
    %482 = vmatprep.subr.bf16.mxu0 0
    %483 = vmatpush1.bf16.msra.mxu0 %v464
    %484 = vmatprep.subr.bf16.mxu0 0
    %485 = vmatpush1.bf16.msra.mxu0 %v465
    %486 = vmatprep.subr.bf16.mxu0 0
    %487 = vmatpush1.bf16.msra.mxu0 %v466
    %488 = vmatprep.subr.bf16.mxu0 0
    %489 = vmatpush1.bf16.msra.mxu0 %v467
    %490 = vmatprep.subr.bf16.mxu0 0
    %491 = vmatpush1.bf16.msra.mxu0 %v468
    %492 = vmatprep.subr.bf16.mxu0 0
    %493 = vmatpush1.bf16.msra.mxu0 %v469
    %494 = vmatprep.subr.bf16.mxu0 0
    %495 = vmatpush1.bf16.msra.mxu0 0
    %496 = vmatprep.subr.bf16.mxu0 0
    %497 = vmatpush1.bf16.msra.mxu0 0
    %498 = vmatprep.subr.bf16.mxu0 0
    %499 = vmatpush1.bf16.msra.mxu0 0
    %500 = vmatprep.subr.bf16.mxu0 0
    %501 = vmatpush1.bf16.msra.mxu0 0
    %502 = vmatprep.subr.bf16.mxu0 0
    %503 = vmatpush1.bf16.msra.mxu0 0
    %504 = vmatprep.subr.bf16.mxu0 0
    %505 = vmatpush1.bf16.msra.mxu0 0
    %506 = vmatprep.subr.bf16.mxu0 0
    %507 = vmatpush1.bf16.msra.mxu0 0
    %508 = vmatprep.subr.bf16.mxu0 0
    %509 = vmatpush1.bf16.msra.mxu0 0
    %510 = vmatprep.mubr.bf16.mxu0 0
    %511 = vmatmul.mubr.bf16.gmra.mrb[0].mxu0 %v413
    %v512 = vpop.f32.mrb[0].mxu0
    %v513 = vadd.f32 0.0, %v512
    %v514 = vpop.f32.mrb[0].mxu0
    %v515 = vpop.f32.mrb[0].mxu0
    %v516 = vadd.f32 0.0, %v515
    %v517 = vpop.f32.mrb[0].mxu0
    %518 = vdwg.mxu0
    %v519 = vadd.f32 %v411, %v513
    %v520 = vadd.f32 %v412, %v516
    %521 = vst.msk [vmem:[#allocation2] sm:$0xff] %vm22, %v519
    %522 = vst.msk [vmem:[#allocation2 + $0x8] sm:$0xff] %vm22, %v520
    %v523 = vld [vmem:[#allocation2] sm:$0xff]
    %v524 = vld [vmem:[#allocation2 + $0x8] sm:$0xff]
    %v525 = vld [vmem:[%s4] sm:$0x1]
    %v527 = vlaneseq
    %v528 = vshrl.u32 %v527, 7
    %v529 = vsub.s32 0, %v528
    %v530 = vrot.slane %v525, %v529
    %v532 = vadd.f32 %v523, %v530
    %v533 = vadd.f32 %v524, %v530
    %534 = vst.msk [vmem:[#allocation3] sm:$0xff] %vm22, %v532
    %535 = vst.msk [vmem:[#allocation3 + $0x8] sm:$0xff] %vm22, %v533
    // Predicated region
    $region22: #{tpu_custom_call.1} parent=1 // pred_check
      _
    $region23: #{tpu_custom_call.1} parent=1 // pred_check_branch
      %537 = sbr.rel (0) target = $region25
    $region24: #{tpu_custom_call.1} parent=1 // pred_region
      %s539 = ssub.s32 256, 256
      %540 = vsyncadd [#allocation4], %s539
      %s541 = sshll.u32 [#allocation3], 4
      %s542 = int_to_ptr.vmem [resolvable:$true] %s541
      %547 = dma.vmem_to_hbm [thread:$0]  %s542, 256, %s5, [#allocation4], 128, 128, 8
    $region25: #{tpu_custom_call.1} parent=1 // pred_fallthru
      _
    // Predicated region
    $region26: #{tpu_custom_call.1} parent=1 // pred_check
      _
    $region27: #{tpu_custom_call.1} parent=1 // pred_check_branch
      %549 = sbr.rel (0) target = $region29
    $region28: #{tpu_custom_call.1} parent=1 // pred_region
      %550 = dma.done [#allocation4], 256
    $region29: #{tpu_custom_call.1} parent=1 // pred_fallthru
      _
    %551 = vsyncpa [#allocation4], 1

</llo_original>
